<compile_context>
chip_gen: v5e
topology: v5e:2x2
jax: 0.10.0
libtpu: 0.0.40
codegen_flags: <defaults>
</compile_context>

<pallas_src>
import numpy as np
import jax
import jax.numpy as jnp
from jax.experimental import pallas as pl
from jax.experimental.pallas import tpu as pltpu

HIDDEN = 32
N_GAUSS = 10
NUM_HEADS = 4
HEAD_DIM = HIDDEN // NUM_HEADS
DIST_THRESHOLD = 1000.0
LN_EPS = 1e-5
BN_EPS = 1e-5
ATOMS_PER_RES = 24

MAX_ROW_TILE = 512          # row tile for the per-row kernels (multiple of 8)
LIG_TILE = 8                # ligand rows per attention grid step
PACK_W = 128                # lane-dense packed width for the MDN-heads output
VMEM_LIMIT = 32 * 1024 * 1024


# ---------------------------------------------------------------------------
# small helpers
# ---------------------------------------------------------------------------
def _round_up(x, m):
    return ((x + m - 1) // m) * m


def _pad_axis(x, axis, target):
    pad = target - x.shape[axis]
    if pad == 0:
        return x
    widths = [(0, 0)] * x.ndim
    widths[axis] = (0, pad)
    return jnp.pad(x, widths)


def _const_spec(shape):
    """Whole-array block whose index_map is constant (weight stays VMEM-resident)."""
    nd = len(shape)
    return pl.BlockSpec(shape, lambda *_args, _nd=nd: (0,) * _nd)


# ---------------------------------------------------------------------------
# Pallas kernels
# ---------------------------------------------------------------------------
def spatial_module_pallas(feat, pos, p):
    """SpatialAwareModule: spatial MLP + fusion MLP (LayerNorm/SiLU) + residual.
    Row-tiled grid; all weights resident."""
    M, C = feat.shape
    H4, H2 = C // 4, C // 2
    TM = min(MAX_ROW_TILE, _round_up(M, 8))
    Mp = _round_up(M, TM)
    feat_p = _pad_axis(feat, 0, Mp)
    pos_p = _pad_axis(pos, 0, Mp)

    def kernel(f_ref, x_ref, w1, b1, w2, b2, wf1, bf1, g, be, wf2, bf2, o_ref):
        f = f_ref[...]
        x = x_ref[...]
        w1f = w1[...]
        # Linear(3, C//4) as 3 broadcast FMAs (contraction dim = 3)
        h1 = (x[:, 0:1] * w1f[0:1, :] + x[:, 1:2] * w1f[1:2, :]
              + x[:, 2:3] * w1f[2:3, :] + b1[...])
        sp = jnp.dot(jax.nn.silu(h1), w2[...],
                     preferred_element_type=jnp.float32) + b2[...]
        # cat([feat, sp]) @ wf1  ==  feat @ wf1[:C] + sp @ wf1[C:]
        wf1f = wf1[...]
        h = (jnp.dot(f, wf1f[:C, :], preferred_element_type=jnp.float32)
             + jnp.dot(sp, wf1f[C:, :], preferred_element_type=jnp.float32)
             + bf1[...])
        mean = jnp.mean(h, axis=-1, keepdims=True)
        var = jnp.mean((h - mean) ** 2, axis=-1, keepdims=True)
        h = (h - mean) * jax.lax.rsqrt(var + LN_EPS) * g[...] + be[...]
        h = jax.nn.silu(h)
        o_ref[...] = (jnp.dot(h, wf2[...], preferred_element_type=jnp.float32)
                      + bf2[...] + f)

    out = pl.pallas_call(
        kernel,
        out_shape=jax.ShapeDtypeStruct((Mp, C), jnp.float32),
        grid=(Mp // TM,),
        in_specs=[pl.BlockSpec((TM, C), lambda i: (i, 0)),
                  pl.BlockSpec((TM, 3), lambda i: (i, 0)),
                  _const_spec((3, H4)), _const_spec((1, H4)),
                  _const_spec((H4, H2)), _const_spec((1, H2)),
                  _const_spec((C + H2, C)), _const_spec((1, C)),
                  _const_spec((1, C)), _const_spec((1, C)),
                  _const_spec((C, C)), _const_spec((1, C))],
        out_specs=pl.BlockSpec((TM, C), lambda i: (i, 0)),
        compiler_params=pltpu.CompilerParams(
            dimension_semantics=("parallel",)),
    )(feat_p, pos_p, p['sp_w1'], p['sp_b1'], p['sp_w2'], p['sp_b2'],
      p['sp_wf1'], p['sp_bf1'], p['sp_ln_g'], p['sp_ln_b'],
      p['sp_wf2'], p['sp_bf2'])
    return out[:M]


def cross_attention_pallas(h_l, h_t, all_feat, mask3, p, tl):
    """CrossAttentionEnhancer with the pair tensor built inside the kernel.
    Grid = (batch, ligand-row tiles); each step handles `tl` ligand rows x all proteins.
    K/V use a fused [H, 2H] projection; output residual + LayerNorm fused."""
    B, N_l, H = h_l.shape
    N_t = h_t.shape[1]
    Nk = all_feat.shape[1]
    C2 = 2 * H
    scale = 1.0 / float(HEAD_DIM ** 0.5)

    wkv = jnp.concatenate([p['ca_wk'], p['ca_wv']], axis=1)   # [H, 2H]
    bkv = jnp.concatenate([p['ca_bk'], p['ca_bv']], axis=1)   # [1, 2H]

    def kernel(l_ref, t_ref, f_ref, m_ref, wq, bq, wkv_r, bkv_r, wo, bo, g, be, o_ref):
        prot = t_ref[0]                 # [N_t, H]
        feat = f_ref[0]                 # [Nk, H]
        m = m_ref[0]                    # [1, Nk]
        kv = jnp.dot(feat, wkv_r[...], preferred_element_type=jnp.float32) + bkv_r[...]
        K = kv[:, :H]
        V = kv[:, H:]
        wq_f, bq_f = wq[...], bq[...]
        wo_f, bo_f = wo[...], bo[...]
        g_f, be_f = g[...], be[...]
        lig = l_ref[0]                  # [tl, H]
        for t in range(tl):             # small static loop over ligand rows in the block
            lig_row = lig[t:t + 1, :]                                   # [1, H]
            pair = jnp.concatenate(
                [jnp.broadcast_to(lig_row, (N_t, H)), prot], axis=-1)   # [N_t, 2H]
            Q = jnp.dot(pair, wq_f, preferred_element_type=jnp.float32) + bq_f
            o = jnp.zeros((N_t, C2), jnp.float32) + bo_f
            for hd in range(NUM_HEADS):
                sl = slice(hd * HEAD_DIM, (hd + 1) * HEAD_DIM)
                s = jax.lax.dot_general(Q[:, sl], K[:, sl], (((1,), (1,)), ((), ())),
                                        preferred_element_type=jnp.float32) * scale
                s = jnp.where(m > 0, s, -1000000000.0)        # masked_fill(~mask, -1e9)
                mx = jnp.max(s, axis=-1, keepdims=True)
                e = jnp.exp(s - mx)
                pw = e * pl.reciprocal(jnp.sum(e, axis=-1, keepdims=True), approx=True)
                oh = jnp.dot(pw, V[:, sl], preferred_element_type=jnp.float32)
                # concat-over-heads @ wo  ==  sum_h  oh @ wo[h*Dh:(h+1)*Dh]
                o = o + jnp.dot(oh, wo_f[sl, :], preferred_element_type=jnp.float32)
            x = o + pair                                      # residual on pair features
            mean = jnp.mean(x, axis=-1, keepdims=True)
            var = jnp.mean((x - mean) ** 2, axis=-1, keepdims=True)
            o_ref[0, t] = (x - mean) * jax.lax.rsqrt(var + LN_EPS) * g_f + be_f

    return pl.pallas_call(
        kernel,
        out_shape=jax.ShapeDtypeStruct((B, N_l, N_t, C2), jnp.float32),
        grid=(B, N_l // tl),
        in_specs=[pl.BlockSpec((1, tl, H), lambda b, i: (b, i, 0)),
                  pl.BlockSpec((1, N_t, H), lambda b, i: (b, 0, 0)),
                  pl.BlockSpec((1, Nk, H), lambda b, i: (b, 0, 0)),
                  pl.BlockSpec((1, 1, Nk), lambda b, i: (b, 0, 0)),
                  _const_spec((C2, H)), _const_spec((1, H)),
                  _const_spec((H, C2)), _const_spec((1, C2)),
                  _const_spec((H, C2)), _const_spec((1, C2)),
                  _const_spec((1, C2)), _const_spec((1, C2))],
        out_specs=pl.BlockSpec((1, tl, N_t, C2), lambda b, i: (b, i, 0, 0)),
        compiler_params=pltpu.CompilerParams(
            dimension_semantics=("parallel", "parallel"),
            vmem_limit_bytes=VMEM_LIMIT),
    )(h_l, h_t, all_feat, mask3,
      p['ca_wq'], p['ca_bq'], wkv, bkv, p['ca_wo'], p['ca_bo'],
      p['ca_ln_g'], p['ca_ln_b'])


def pair_min_dist_pallas(x_pos, y_pos_a):
    """compute_euclidean_distances_matrix: running minimum over the 24 atoms of each
    residue of squared distances (VPU broadcast FMAs, lane dim = N_t), sqrt once at end.
    y_pos_a layout: [B, 24, 3, N_t] (atom outermost, residue on lanes).
    # TODO(synk): reference computes this in float64 and maps NaN->1e4; here we compute
    # in float32 and clamp the squared distance to >=0 before the sqrt."""
    B, N_l, _ = x_pos.shape
    A, N_t = y_pos_a.shape[1], y_pos_a.shape[3]

    def kernel(x_ref, y_ref, o_ref):
        x = x_ref[0]                    # [N_l, 3]
        y = y_ref[0]                    # [A, 3, N_t]
        x0, x1, x2 = x[:, 0:1], x[:, 1:2], x[:, 2:3]
        dmin = None
        for a in range(A):
            ya = y[a]                   # [3, N_t]
            dx = x0 - ya[0:1, :]
            dy = x1 - ya[1:2, :]
            dz = x2 - ya[2:3, :]
            d2 = dx * dx + dy * dy + dz * dz
            dmin = d2 if dmin is None else jnp.minimum(dmin, d2)
        o_ref[0] = jnp.sqrt(jnp.maximum(dmin, 0.0))

    return pl.pallas_call(
        kernel,
        out_shape=jax.ShapeDtypeStruct((B, N_l, N_t), jnp.float32),
        grid=(B,),
        in_specs=[pl.BlockSpec((1, N_l, 3), lambda b: (b, 0, 0)),
                  pl.BlockSpec((1, A, 3, N_t), lambda b: (b, 0, 0, 0))],
        out_specs=pl.BlockSpec((1, N_l, N_t), lambda b: (b, 0, 0)),
        compiler_params=pltpu.CompilerParams(dimension_semantics=("parallel",)),
    )(x_pos, y_pos_a)


def mdn_heads_pallas(c, p):
    """MLP(+BN eval+ELU), z_pi/z_sigma/z_mu heads, uncertainty estimator and adaptive
    threshold branch. Row-tiled; tiny matmuls fused; one lane-dense packed output
    [M, 128] = [pi(10) | sigma(10) | mu(10) | unc(1) | thr(1) | imp(1) | pad]."""
    M, C2 = c.shape
    C = C2 // 2
    NG = N_GAUSS
    TM = min(MAX_ROW_TILE, _round_up(M, 8))
    Mp = _round_up(M, TM)
    c_p = _pad_axis(c, 0, Mp)

    # host-side weight fusion
    bn_g_eff = p['bn_g'] * float(1.0 / np.sqrt(1.0 + BN_EPS))   # running_mean=0, var=1
    w_a = jnp.concatenate([p['mlp_w'], p['ath_w1']], axis=1)    # [2C, 2C]
    b_a = jnp.concatenate([p['mlp_b'], p['ath_b1']], axis=1)    # [1, 2C]
    w_h = jnp.concatenate([p['pi_w'], p['sg_w'], p['mu_w'], p['unc_w1']], axis=1)
    b_h = jnp.concatenate([p['pi_b'], p['sg_b'], p['mu_b'], p['unc_b1']], axis=1)
    HW = 3 * NG + C // 2                                         # 46

    def kernel(c_ref, wa, ba, bng, bnb, wh, bh, wu2, bu2, ag, ab, wa2, ba2, o_ref):
        cv = c_ref[...]
        t = jnp.dot(cv, wa[...], preferred_element_type=jnp.float32) + ba[...]
        h_pre, a_pre = t[:, :C], t[:, C:]
        h = jax.nn.elu(h_pre * bng[...] + bnb[...])              # BN(eval)+ELU, Dropout=id
        z = jnp.dot(h, wh[...], preferred_element_type=jnp.float32) + bh[...]
        # pi head (softmax with EUP reciprocal)
        logits = z[:, :NG]
        mx = jnp.max(logits, axis=-1, keepdims=True)
        e = jnp.exp(logits - mx)
        pi = e * pl.reciprocal(jnp.sum(e, axis=-1, keepdims=True), approx=True)
        sigma = jax.nn.elu(z[:, NG:2 * NG]) + 1.1
        mu = jax.nn.elu(z[:, 2 * NG:3 * NG]) + 1.0
        u = jax.nn.silu(z[:, 3 * NG:3 * NG + C // 2])
        unc = jax.nn.sigmoid(
            jnp.dot(u, wu2[...], preferred_element_type=jnp.float32) + bu2[...])
        # adaptive threshold branch (from pre-MLP pair features)
        a = a_pre
        mean = jnp.mean(a, axis=-1, keepdims=True)
        var = jnp.mean((a - mean) ** 2, axis=-1, keepdims=True)
        a = (a - mean) * jax.lax.rsqrt(var + LN_EPS) * ag[...] + ab[...]
        a = jax.nn.silu(a)
        a2 = jnp.dot(a, wa2[...], preferred_element_type=jnp.float32) + ba2[...]
        thr = jax.nn.softplus(a2[:, 0:1]) + 10.0
        imp = jax.nn.sigmoid(a2[:, 1:2])
        pad = jnp.zeros((pi.shape[0], PACK_W - (3 * NG + 3)), jnp.float32)
        o_ref[...] = jnp.concatenate([pi, sigma, mu, unc, thr, imp, pad], axis=-1)

    packed = pl.pallas_call(
        kernel,
        out_shape=jax.ShapeDtypeStruct((Mp, PACK_W), jnp.float32),
        grid=(Mp // TM,),
        in_specs=[pl.BlockSpec((TM, C2), lambda i: (i, 0)),
                  _const_spec((C2, C2)), _const_spec((1, C2)),
                  _const_spec((1, C)), _const_spec((1, C)),
                  _const_spec((C, HW)), _const_spec((1, HW)),
                  _const_spec((C // 2, 1)), _const_spec((1, 1)),
                  _const_spec((1, C)), _const_spec((1, C)),
                  _const_spec((C, 2)), _const_spec((1, 2))],
        out_specs=pl.BlockSpec((TM, PACK_W), lambda i: (i, 0)),
        compiler_params=pltpu.CompilerParams(
            dimension_semantics=("parallel",),
            vmem_limit_bytes=VMEM_LIMIT),
    )(c_p, w_a, b_a, bn_g_eff, p['bn_b'], w_h, b_h,
      p['unc_w2'], p['unc_b2'], p['ath_ln_g'], p['ath_ln_b'],
      p['ath_w2'], p['ath_b2'])
    return packed[:M]


# ---------------------------------------------------------------------------
# Glue (plain JAX / numpy)
# ---------------------------------------------------------------------------
def to_dense_batch(x, batch, B):
    """torch_geometric.utils.to_dense_batch with fill_value=0 (batch must be sorted)."""
    batch = np.asarray(batch)
    counts = np.bincount(batch, minlength=B)
    N = int(counts.max())
    pos = np.concatenate([np.arange(c) for c in counts]).astype(np.int32)
    out = jnp.zeros((B, N) + x.shape[1:], x.dtype)
    out = out.at[batch, pos].set(x)
    mask = np.zeros((B, N), dtype=bool)
    mask[batch, pos] = True
    return out, mask


def init_params(key):
    names = [('sp_w1', 3, HIDDEN // 4), ('sp_w2', HIDDEN // 4, HIDDEN // 2),
             ('sp_wf1', HIDDEN + HIDDEN // 2, HIDDEN), ('sp_wf2', HIDDEN, HIDDEN),
             ('ca_wq', 2 * HIDDEN, HIDDEN), ('ca_wk', HIDDEN, HIDDEN),
             ('ca_wv', HIDDEN, HIDDEN), ('ca_wo', HIDDEN, 2 * HIDDEN),
             ('mlp_w', 2 * HIDDEN, HIDDEN),
             ('pi_w', HIDDEN, N_GAUSS), ('sg_w', HIDDEN, N_GAUSS), ('mu_w', HIDDEN, N_GAUSS),
             ('at_w', HIDDEN, 18), ('bt_w', 2 * HIDDEN, 5),
             ('ath_w1', 2 * HIDDEN, HIDDEN), ('ath_w2', HIDDEN, 2),
             ('unc_w1', HIDDEN, HIDDEN // 2), ('unc_w2', HIDDEN // 2, 1)]
    params = {}
    keys = jax.random.split(key, len(names))
    for k, (name, fin, fout) in zip(keys, names):
        k1, k2 = jax.random.split(k)
        bound = 1.0 / np.sqrt(fin)
        params[name] = jax.random.uniform(k1, (fin, fout), jnp.float32, -bound, bound)
        params[name.replace('_w', '_b')] = jax.random.uniform(
            k2, (1, fout), jnp.float32, -bound, bound)
    # LayerNorm / BatchNorm affine params: PyTorch default init (gamma=1, beta=0)
    for g, b, d in [('sp_ln_g', 'sp_ln_b', HIDDEN), ('ca_ln_g', 'ca_ln_b', 2 * HIDDEN),
                    ('bn_g', 'bn_b', HIDDEN), ('ath_ln_g', 'ath_ln_b', HIDDEN)]:
        params[g] = jnp.ones((1, d), jnp.float32)
        params[b] = jnp.zeros((1, d), jnp.float32)
    return params


def improved_mdn_forward(params, loop_s, loop_pos, loop_batch,
                         pro_s, pro_pos, pro_batch, edge_index):
    B = int(max(int(loop_batch.max()), int(pro_batch.max()))) + 1
    h_l_x, l_mask = to_dense_batch(loop_s, loop_batch, B)
    h_t_x, t_mask = to_dense_batch(pro_s, pro_batch, B)
    h_l_pos, _ = to_dense_batch(loop_pos, loop_batch, B)
    h_t_pos, _ = to_dense_batch(pro_pos, pro_batch, B)      # [B, N_t, 24, 3]
    N_l0, N_t = h_l_x.shape[1], h_t_x.shape[1]

    # pad ligand node dim to a multiple of the attention ligand tile (padded rows are
    # masked everywhere downstream, matching to_dense_batch fill semantics)
    N_l = _round_up(N_l0, LIG_TILE)
    h_l_x = _pad_axis(h_l_x, 1, N_l)
    h_l_pos = _pad_axis(h_l_pos, 1, N_l)
    l_mask = np.pad(l_mask, ((0, 0), (0, N_l - N_l0)))

    # SpatialAwareModule (shared) on ligand and protein nodes
    h_l_x = spatial_module_pallas(h_l_x.reshape(B * N_l, HIDDEN),
                                  h_l_pos.reshape(B * N_l, 3),
                                  params).reshape(B, N_l, HIDDEN)
    # TODO(synk): reference feeds h_t_pos [B,N_t,24,3] into Linear(3,.) then concatenates with
    # [B,N_t,hidden] features, which is shape-inconsistent in PyTorch; we use the per-residue
    # centroid (mean over the 24 atoms) as the protein position.
    t_centroid = jnp.mean(h_t_pos, axis=2)
    h_t_x = spatial_module_pallas(h_t_x.reshape(B * N_t, HIDDEN),
                                  t_centroid.reshape(B * N_t, 3),
                                  params).reshape(B, N_t, HIDDEN)

    # cross attention enhancer: pair features are built inside the kernel (never in HBM)
    all_feat = jnp.concatenate([h_l_x, h_t_x], axis=1)
    all_mask = np.concatenate([l_mask, t_mask], axis=1).astype(np.float32)
    mask3 = jnp.asarray(all_mask.reshape(B, 1, N_l + N_t))
    pair_attn = cross_attention_pallas(h_l_x, h_t_x, all_feat, mask3, params, LIG_TILE)

    # masked pair selection (mask is static -> host-side numpy indices)
    C_mask = l_mask[:, :, None] & t_mask[:, None, :]
    flat_idx = np.nonzero(C_mask.reshape(-1))[0]
    C_sel = pair_attn.reshape(B * N_l * N_t, 2 * HIDDEN)[flat_idx]
    C_batch = np.broadcast_to(np.arange(B)[:, None, None],
                              (B, N_l, N_t)).reshape(-1)[flat_idx]

    # pairwise min distances (over 24 atoms per residue), atom index outermost
    y_a = jnp.transpose(h_t_pos, (0, 2, 3, 1))              # [B, 24, 3, N_t]
    dist_dense = pair_min_dist_pallas(h_l_pos, y_a)         # [B, N_l, N_t]
    dist = dist_dense.reshape(-1)[flat_idx]

    # MDN heads + adaptive threshold + uncertainty (lane-dense packed output)
    packed = mdn_heads_pallas(C_sel, params)
    pi = packed[:, 0:N_GAUSS]
    sigma = packed[:, N_GAUSS:2 * N_GAUSS]
    mu = packed[:, 2 * N_GAUSS:3 * N_GAUSS]
    uncertainty = packed[:, 30:31]
    adaptive_threshold = packed[:, 31:32]
    importance = packed[:, 32:33]

    # matches reference broadcasting: [M] vs [M,1] -> [M,M], then unsqueeze(1) -> [M,1,M]
    dist_filtered = jnp.where(dist < adaptive_threshold, dist,
                              jnp.full_like(dist, DIST_THRESHOLD))

    # tiny linears: plain XLA (not worth a kernel launch)
    atom_types = jnp.dot(loop_s, params['at_w']) + params['at_b']
    bond_in = jnp.concatenate([loop_s[edge_index[0]], loop_s[edge_index[1]]], axis=1)
    bond_types = jnp.dot(bond_in, params['bt_w']) + params['bt_b']

    return {'pi': pi, 'sigma': sigma, 'mu': mu,
            'dist': dist_filtered[:, None, :],
            'C_batch': jnp.asarray(C_batch),
            'atom_types': atom_types, 'bond_types': bond_types,
            'importance_weights': importance, 'uncertainty': uncertainty,
            'adaptive_threshold': adaptive_threshold}


# ---------------------------------------------------------------------------
if __name__ == "__main__":
    key = jax.random.PRNGKey(0)
    kp, k1, k2, k3, k4 = jax.random.split(key, 5)
    params = init_params(kp)

    # 2 graphs; ligand (loop) node counts [5, 7]; protein residue counts [3, 4]
    loop_batch = np.array([0] * 5 + [1] * 7, dtype=np.int32)
    pro_batch = np.array([0] * 3 + [1] * 4, dtype=np.int32)
    n_loop, n_pro = loop_batch.shape[0], pro_batch.shape[0]

    loop_s = jax.random.normal(k1, (n_loop, HIDDEN), jnp.float32)
    loop_pos = jax.random.normal(k2, (n_loop, 3), jnp.float32) * 5.0
    pro_s = jax.random.normal(k3, (n_pro, HIDDEN), jnp.float32)
    pro_pos = jax.random.normal(k4, (n_pro, ATOMS_PER_RES, 3), jnp.float32) * 5.0
    edge_index = np.array([[0, 1, 2, 3, 5, 6, 7, 8, 9, 10],
                           [1, 2, 3, 4, 6, 7, 8, 9, 10, 11]], dtype=np.int32)

    out = improved_mdn_forward(params, loop_s, loop_pos, loop_batch,
                               pro_s, pro_pos, pro_batch, edge_index)
    out = jax.block_until_ready(out)

    M = out['pi'].shape[0]
    assert M == 5 * 3 + 7 * 4
    assert out['pi'].shape == (M, N_GAUSS)
    assert out['sigma'].shape == (M, N_GAUSS)
    assert out['mu'].shape == (M, N_GAUSS)
    assert out['dist'].shape == (M, 1, M)
    assert out['uncertainty'].shape == (M, 1)
    assert out['adaptive_threshold'].shape == (M, 1)
    assert out['importance_weights'].shape == (M, 1)
    assert out['atom_types'].shape == (n_loop, 18)
    assert out['bond_types'].shape == (edge_index.shape[1], 5)
    assert bool(jnp.all(jnp.isfinite(out['pi'])))
    assert bool(jnp.all(jnp.isfinite(out['sigma'])))
    assert bool(jnp.all(jnp.isfinite(out['dist'])))
    print("KERNEL_OK")
</pallas_src>

<mosaic_0001>
module attributes {stable_mosaic.version = 11 : i64} {
  func.func @kernel(%arg0: i32, %arg1: memref<16x32xf32, #tpu.memory_space<vmem>>, %arg2: memref<16x3xf32, #tpu.memory_space<vmem>>, %arg3: memref<3x8xf32, #tpu.memory_space<vmem>>, %arg4: memref<1x8xf32, #tpu.memory_space<vmem>>, %arg5: memref<8x16xf32, #tpu.memory_space<vmem>>, %arg6: memref<1x16xf32, #tpu.memory_space<vmem>>, %arg7: memref<48x32xf32, #tpu.memory_space<vmem>>, %arg8: memref<1x32xf32, #tpu.memory_space<vmem>>, %arg9: memref<1x32xf32, #tpu.memory_space<vmem>>, %arg10: memref<1x32xf32, #tpu.memory_space<vmem>>, %arg11: memref<32x32xf32, #tpu.memory_space<vmem>>, %arg12: memref<1x32xf32, #tpu.memory_space<vmem>>, %arg13: memref<16x32xf32, #tpu.memory_space<vmem>>) attributes {dimension_semantics = [#tpu.dimension_semantics<parallel>], iteration_bounds = array<i64: 1>, scalar_prefetch = 0 : i64, scratch_operands = 0 : i64, tpu.core_type = #tpu.core_type<tc>, window_params = [{transform_indices = @transform_0, window_bounds = array<i64: 16, 32>}, {transform_indices = @transform_1, window_bounds = array<i64: 16, 3>}, {pipeline_mode = #tpu.pipeline_mode<synchronous>, transform_indices = @transform_2, window_bounds = array<i64: 3, 8>}, {pipeline_mode = #tpu.pipeline_mode<synchronous>, transform_indices = @transform_3, window_bounds = array<i64: 1, 8>}, {pipeline_mode = #tpu.pipeline_mode<synchronous>, transform_indices = @transform_4, window_bounds = array<i64: 8, 16>}, {pipeline_mode = #tpu.pipeline_mode<synchronous>, transform_indices = @transform_5, window_bounds = array<i64: 1, 16>}, {pipeline_mode = #tpu.pipeline_mode<synchronous>, transform_indices = @transform_6, window_bounds = array<i64: 48, 32>}, {pipeline_mode = #tpu.pipeline_mode<synchronous>, transform_indices = @transform_7, window_bounds = array<i64: 1, 32>}, {pipeline_mode = #tpu.pipeline_mode<synchronous>, transform_indices = @transform_8, window_bounds = array<i64: 1, 32>}, {pipeline_mode = #tpu.pipeline_mode<synchronous>, transform_indices = @transform_9, window_bounds = array<i64: 1, 32>}, {pipeline_mode = #tpu.pipeline_mode<synchronous>, transform_indices = @transform_10, window_bounds = array<i64: 32, 32>}, {pipeline_mode = #tpu.pipeline_mode<synchronous>, transform_indices = @transform_11, window_bounds = array<i64: 1, 32>}, {transform_indices = @transform_12, window_bounds = array<i64: 16, 32>}]} {
    %c0 = arith.constant 0 : index
    %c0_0 = arith.constant 0 : index
    %0 = vector.load %arg1[%c0, %c0_0] : memref<16x32xf32, #tpu.memory_space<vmem>>, vector<16x32xf32>
    %c0_1 = arith.constant 0 : index
    %c0_2 = arith.constant 0 : index
    %1 = vector.load %arg2[%c0_1, %c0_2] : memref<16x3xf32, #tpu.memory_space<vmem>>, vector<16x3xf32>
    %c0_3 = arith.constant 0 : index
    %c0_4 = arith.constant 0 : index
    %2 = vector.load %arg3[%c0_3, %c0_4] : memref<3x8xf32, #tpu.memory_space<vmem>>, vector<3x8xf32>
    %3 = vector.extract_strided_slice %1 {offsets = [0, 0], sizes = [16, 1], strides = [1, 1]} : vector<16x3xf32> to vector<16x1xf32>
    %4 = vector.extract_strided_slice %2 {offsets = [0, 0], sizes = [1, 8], strides = [1, 1]} : vector<3x8xf32> to vector<1x8xf32>
    %5 = vector.broadcast %3 : vector<16x1xf32> to vector<16x8xf32>
    %6 = vector.broadcast %4 : vector<1x8xf32> to vector<16x8xf32>
    %7 = arith.mulf %5, %6 : vector<16x8xf32>
    %8 = vector.extract_strided_slice %1 {offsets = [0, 1], sizes = [16, 1], strides = [1, 1]} : vector<16x3xf32> to vector<16x1xf32>
    %9 = vector.extract_strided_slice %2 {offsets = [1, 0], sizes = [1, 8], strides = [1, 1]} : vector<3x8xf32> to vector<1x8xf32>
    %10 = vector.broadcast %8 : vector<16x1xf32> to vector<16x8xf32>
    %11 = vector.broadcast %9 : vector<1x8xf32> to vector<16x8xf32>
    %12 = arith.mulf %10, %11 : vector<16x8xf32>
    %13 = arith.addf %7, %12 : vector<16x8xf32>
    %14 = vector.extract_strided_slice %1 {offsets = [0, 2], sizes = [16, 1], strides = [1, 1]} : vector<16x3xf32> to vector<16x1xf32>
    %15 = vector.extract_strided_slice %2 {offsets = [2, 0], sizes = [1, 8], strides = [1, 1]} : vector<3x8xf32> to vector<1x8xf32>
    %16 = vector.broadcast %14 : vector<16x1xf32> to vector<16x8xf32>
    %17 = vector.broadcast %15 : vector<1x8xf32> to vector<16x8xf32>
    %18 = arith.mulf %16, %17 : vector<16x8xf32>
    %19 = arith.addf %13, %18 : vector<16x8xf32>
    %c0_5 = arith.constant 0 : index
    %c0_6 = arith.constant 0 : index
    %20 = vector.load %arg4[%c0_5, %c0_6] : memref<1x8xf32, #tpu.memory_space<vmem>>, vector<1x8xf32>
    %21 = vector.broadcast %20 : vector<1x8xf32> to vector<16x8xf32>
    %22 = arith.addf %19, %21 : vector<16x8xf32>
    %23 = arith.negf %22 : vector<16x8xf32>
    %24 = math.exp %23 : vector<16x8xf32>
    %cst = arith.constant 1.000000e+00 : f32
    %25 = vector.broadcast %cst : f32 to vector<16x8xf32>
    %26 = arith.addf %25, %24 : vector<16x8xf32>
    %27 = arith.divf %25, %26 : vector<16x8xf32>
    %28 = arith.mulf %22, %27 : vector<16x8xf32>
    %c0_7 = arith.constant 0 : index
    %c0_8 = arith.constant 0 : index
    %29 = vector.load %arg5[%c0_7, %c0_8] : memref<8x16xf32, #tpu.memory_space<vmem>>, vector<8x16xf32>
    %cst_9 = arith.constant dense<0.000000e+00> : vector<16x16xf32>
    %30 = tpu.matmul %28, %29, %cst_9 {dimension_numbers = #tpu.dot_dimension_numbers<[1], [0], [0], [1], [0, 0, 1, 1], [], []>} : vector<16x8xf32>, vector<8x16xf32>, vector<16x16xf32> -> vector<16x16xf32>
    %c0_10 = arith.constant 0 : index
    %c0_11 = arith.constant 0 : index
    %31 = vector.load %arg6[%c0_10, %c0_11] : memref<1x16xf32, #tpu.memory_space<vmem>>, vector<1x16xf32>
    %32 = vector.broadcast %31 : vector<1x16xf32> to vector<16x16xf32>
    %33 = arith.addf %30, %32 : vector<16x16xf32>
    %c0_12 = arith.constant 0 : index
    %c0_13 = arith.constant 0 : index
    %34 = vector.load %arg7[%c0_12, %c0_13] : memref<48x32xf32, #tpu.memory_space<vmem>>, vector<48x32xf32>
    %35 = vector.extract_strided_slice %34 {offsets = [0, 0], sizes = [32, 32], strides = [1, 1]} : vector<48x32xf32> to vector<32x32xf32>
    %cst_14 = arith.constant dense<0.000000e+00> : vector<16x32xf32>
    %36 = tpu.matmul %0, %35, %cst_14 {dimension_numbers = #tpu.dot_dimension_numbers<[1], [0], [0], [1], [0, 0, 1, 1], [], []>} : vector<16x32xf32>, vector<32x32xf32>, vector<16x32xf32> -> vector<16x32xf32>
    %37 = vector.extract_strided_slice %34 {offsets = [32, 0], sizes = [16, 32], strides = [1, 1]} : vector<48x32xf32> to vector<16x32xf32>
    %cst_15 = arith.constant dense<0.000000e+00> : vector<16x32xf32>
    %38 = tpu.matmul %33, %37, %cst_15 {dimension_numbers = #tpu.dot_dimension_numbers<[1], [0], [0], [1], [0, 0, 1, 1], [], []>} : vector<16x16xf32>, vector<16x32xf32>, vector<16x32xf32> -> vector<16x32xf32>
    %39 = arith.addf %36, %38 : vector<16x32xf32>
    %c0_16 = arith.constant 0 : index
    %c0_17 = arith.constant 0 : index
    %40 = vector.load %arg8[%c0_16, %c0_17] : memref<1x32xf32, #tpu.memory_space<vmem>>, vector<1x32xf32>
    %41 = vector.broadcast %40 : vector<1x32xf32> to vector<16x32xf32>
    %42 = arith.addf %39, %41 : vector<16x32xf32>
    %cst_18 = arith.constant dense<0.000000e+00> : vector<16xf32>
    %43 = vector.multi_reduction <add>, %42, %cst_18 [1] : vector<16x32xf32> to vector<16xf32>
    %44 = vector.shape_cast %43 : vector<16xf32> to vector<16x1xf32>
    %cst_19 = arith.constant 3.200000e+01 : f32
    %45 = vector.broadcast %cst_19 : f32 to vector<16x1xf32>
    %46 = arith.divf %44, %45 : vector<16x1xf32>
    %47 = vector.broadcast %46 : vector<16x1xf32> to vector<16x32xf32>
    %48 = arith.subf %42, %47 : vector<16x32xf32>
    %49 = arith.mulf %48, %48 : vector<16x32xf32>
    %cst_20 = arith.constant dense<0.000000e+00> : vector<16xf32>
    %50 = vector.multi_reduction <add>, %49, %cst_20 [1] : vector<16x32xf32> to vector<16xf32>
    %51 = vector.shape_cast %50 : vector<16xf32> to vector<16x1xf32>
    %cst_21 = arith.constant 3.200000e+01 : f32
    %52 = vector.broadcast %cst_21 : f32 to vector<16x1xf32>
    %53 = arith.divf %51, %52 : vector<16x1xf32>
    %54 = vector.broadcast %46 : vector<16x1xf32> to vector<16x32xf32>
    %55 = arith.subf %42, %54 : vector<16x32xf32>
    %cst_22 = arith.constant 9.99999974E-6 : f32
    %56 = vector.broadcast %cst_22 : f32 to vector<16x1xf32>
    %57 = arith.addf %53, %56 : vector<16x1xf32>
    %58 = math.rsqrt %57 : vector<16x1xf32>
    %59 = vector.broadcast %58 : vector<16x1xf32> to vector<16x32xf32>
    %60 = arith.mulf %55, %59 : vector<16x32xf32>
    %c0_23 = arith.constant 0 : index
    %c0_24 = arith.constant 0 : index
    %61 = vector.load %arg9[%c0_23, %c0_24] : memref<1x32xf32, #tpu.memory_space<vmem>>, vector<1x32xf32>
    %62 = vector.broadcast %61 : vector<1x32xf32> to vector<16x32xf32>
    %63 = arith.mulf %60, %62 : vector<16x32xf32>
    %c0_25 = arith.constant 0 : index
    %c0_26 = arith.constant 0 : index
    %64 = vector.load %arg10[%c0_25, %c0_26] : memref<1x32xf32, #tpu.memory_space<vmem>>, vector<1x32xf32>
    %65 = vector.broadcast %64 : vector<1x32xf32> to vector<16x32xf32>
    %66 = arith.addf %63, %65 : vector<16x32xf32>
    %67 = arith.negf %66 : vector<16x32xf32>
    %68 = math.exp %67 : vector<16x32xf32>
    %cst_27 = arith.constant 1.000000e+00 : f32
    %69 = vector.broadcast %cst_27 : f32 to vector<16x32xf32>
    %70 = arith.addf %69, %68 : vector<16x32xf32>
    %71 = arith.divf %69, %70 : vector<16x32xf32>
    %72 = arith.mulf %66, %71 : vector<16x32xf32>
    %c0_28 = arith.constant 0 : index
    %c0_29 = arith.constant 0 : index
    %73 = vector.load %arg11[%c0_28, %c0_29] : memref<32x32xf32, #tpu.memory_space<vmem>>, vector<32x32xf32>
    %cst_30 = arith.constant dense<0.000000e+00> : vector<16x32xf32>
    %74 = tpu.matmul %72, %73, %cst_30 {dimension_numbers = #tpu.dot_dimension_numbers<[1], [0], [0], [1], [0, 0, 1, 1], [], []>} : vector<16x32xf32>, vector<32x32xf32>, vector<16x32xf32> -> vector<16x32xf32>
    %c0_31 = arith.constant 0 : index
    %c0_32 = arith.constant 0 : index
    %75 = vector.load %arg12[%c0_31, %c0_32] : memref<1x32xf32, #tpu.memory_space<vmem>>, vector<1x32xf32>
    %76 = vector.broadcast %75 : vector<1x32xf32> to vector<16x32xf32>
    %77 = arith.addf %74, %76 : vector<16x32xf32>
    %78 = arith.addf %77, %0 : vector<16x32xf32>
    %c0_33 = arith.constant 0 : index
    %c0_34 = arith.constant 0 : index
    %79 = vector.load %arg13[%c0_33, %c0_34] : memref<16x32xf32, #tpu.memory_space<vmem>>, vector<16x32xf32>
    tpu.vector_store %arg13[%c0_33, %c0_34], %78 {strides = array<i32>} : memref<16x32xf32, #tpu.memory_space<vmem>>, vector<16x32xf32>,
    return
  }
  func.func @transform_0(%arg0: i32) -> (i32, i32) {
    %c0_i32 = arith.constant 0 : i32
    %c0_i32_0 = arith.constant 0 : i32
    return %arg0, %c0_i32 : i32, i32
  }
  func.func @transform_1(%arg0: i32) -> (i32, i32) {
    %c0_i32 = arith.constant 0 : i32
    %c0_i32_0 = arith.constant 0 : i32
    return %arg0, %c0_i32 : i32, i32
  }
  func.func @transform_2(%arg0: i32) -> (i32, i32) {
    %c0_i32 = arith.constant 0 : i32
    %c0_i32_0 = arith.constant 0 : i32
    %c0_i32_1 = arith.constant 0 : i32
    return %c0_i32, %c0_i32_0 : i32, i32
  }
  func.func @transform_3(%arg0: i32) -> (i32, i32) {
    %c0_i32 = arith.constant 0 : i32
    %c0_i32_0 = arith.constant 0 : i32
    %c0_i32_1 = arith.constant 0 : i32
    return %c0_i32, %c0_i32_0 : i32, i32
  }
  func.func @transform_4(%arg0: i32) -> (i32, i32) {
    %c0_i32 = arith.constant 0 : i32
    %c0_i32_0 = arith.constant 0 : i32
    %c0_i32_1 = arith.constant 0 : i32
    return %c0_i32, %c0_i32_0 : i32, i32
  }
  func.func @transform_5(%arg0: i32) -> (i32, i32) {
    %c0_i32 = arith.constant 0 : i32
    %c0_i32_0 = arith.constant 0 : i32
    %c0_i32_1 = arith.constant 0 : i32
    return %c0_i32, %c0_i32_0 : i32, i32
  }
  func.func @transform_6(%arg0: i32) -> (i32, i32) {
    %c0_i32 = arith.constant 0 : i32
    %c0_i32_0 = arith.constant 0 : i32
    %c0_i32_1 = arith.constant 0 : i32
    return %c0_i32, %c0_i32_0 : i32, i32
  }
  func.func @transform_7(%arg0: i32) -> (i32, i32) {
    %c0_i32 = arith.constant 0 : i32
    %c0_i32_0 = arith.constant 0 : i32
    %c0_i32_1 = arith.constant 0 : i32
    return %c0_i32, %c0_i32_0 : i32, i32
  }
  func.func @transform_8(%arg0: i32) -> (i32, i32) {
    %c0_i32 = arith.constant 0 : i32
    %c0_i32_0 = arith.constant 0 : i32
    %c0_i32_1 = arith.constant 0 : i32
    return %c0_i32, %c0_i32_0 : i32, i32
  }
  func.func @transform_9(%arg0: i32) -> (i32, i32) {
    %c0_i32 = arith.constant 0 : i32
    %c0_i32_0 = arith.constant 0 : i32
    %c0_i32_1 = arith.constant 0 : i32
    return %c0_i32, %c0_i32_0 : i32, i32
  }
  func.func @transform_10(%arg0: i32) -> (i32, i32) {
    %c0_i32 = arith.constant 0 : i32
    %c0_i32_0 = arith.constant 0 : i32
    %c0_i32_1 = arith.constant 0 : i32
    return %c0_i32, %c0_i32_0 : i32, i32
  }
  func.func @transform_11(%arg0: i32) -> (i32, i32) {
    %c0_i32 = arith.constant 0 : i32
    %c0_i32_0 = arith.constant 0 : i32
    %c0_i32_1 = arith.constant 0 : i32
    return %c0_i32, %c0_i32_0 : i32, i32
  }
  func.func @transform_12(%arg0: i32) -> (i32, i32) {
    %c0_i32 = arith.constant 0 : i32
    %c0_i32_0 = arith.constant 0 : i32
    return %arg0, %c0_i32 : i32, i32
  }
}

</mosaic_0001>

<llo_original>
// kernel: tpu_custom_call.1
$region0: #{tpu_custom_call.1}
  #allocation0 [shape = 'u32[]', space=smem, size = 0x4, offset = 0x4, fixed_abs, tag = 'smem constant byte address 0x4 - core index']
  #allocation1 [shape = 'u32[72,128]{1,0:T(1,128)}', space=vmem, size = 0x9000, scoped, tag = 'internal scratch']
  %s0 = inlined_call_operand.vmem [shape: f32[16,32], index: 0, kind: input, shape index: {}]
  %s1 = inlined_call_operand.vmem [shape: f32[16,3], index: 1, kind: input, shape index: {}]
  %s2 = inlined_call_operand.vmem [shape: f32[3,8], index: 2, kind: input, shape index: {}]
  %s3 = inlined_call_operand.vmem [shape: f32[1,8], index: 3, kind: input, shape index: {}]
  %s4 = inlined_call_operand.vmem [shape: f32[8,16], index: 4, kind: input, shape index: {}]
  %s5 = inlined_call_operand.vmem [shape: f32[1,16], index: 5, kind: input, shape index: {}]
  %s6 = inlined_call_operand.vmem [shape: f32[48,32], index: 6, kind: input, shape index: {}]
  %s7 = inlined_call_operand.vmem [shape: f32[1,32], index: 7, kind: input, shape index: {}]
  %s8 = inlined_call_operand.vmem [shape: f32[1,32], index: 8, kind: input, shape index: {}]
  %s9 = inlined_call_operand.vmem [shape: f32[1,32], index: 9, kind: input, shape index: {}]
  %s10 = inlined_call_operand.vmem [shape: f32[32,32], index: 10, kind: input, shape index: {}]
  %s11 = inlined_call_operand.vmem [shape: f32[1,32], index: 11, kind: input, shape index: {}]
  %s12 = inlined_call_operand.hbm [shape: f32[16,32], index: 12, kind: output, shape index: {}]
  %s13 = sld [smem:[#allocation0]]
  $region58: #{tpu_custom_call.1} parent=0
    _
  %s15 = ssub.s32 1, %s13
  %s16 = scalar_select 0, %s15, %s13
  $region1: #{tpu_custom_call.1} parent=0
    #allocation2 [shape = 'u8[8192]{0}', space=vmem, size = 0x2000, scoped, tag = 'output window, operand 0, single buffered']
    #allocation3 [shape = 's32[1]{0}', space=sflag, size = 0x4, scoped, tag = 'scoped memory for tpu_custom_call.1']
    %17 = vsyncpa [#allocation3], 0
    // Predicated region
    $region2: #{tpu_custom_call.1} parent=1 // pred_check
      _
    $region3: #{tpu_custom_call.1} parent=1 // pred_check_branch
      %19 = sbr.rel (0) target = $region5
    $region4: #{tpu_custom_call.1} parent=1 // pred_region
      _
    $region5: #{tpu_custom_call.1} parent=1 // pred_fallthru
      _
    // Predicated region
    $region6: #{tpu_custom_call.1} parent=1 // pred_check
      _
    $region7: #{tpu_custom_call.1} parent=1 // pred_check_branch
      %21 = sbr.rel (0) target = $region9
    $region8: #{tpu_custom_call.1} parent=1 // pred_region
      _
    $region9: #{tpu_custom_call.1} parent=1 // pred_fallthru
      _
    // Predicated region
    $region10: #{tpu_custom_call.1} parent=1 // pred_check
      _
    $region11: #{tpu_custom_call.1} parent=1 // pred_check_branch
      %23 = sbr.rel (0) target = $region13
    $region12: #{tpu_custom_call.1} parent=1 // pred_region
      _
    $region13: #{tpu_custom_call.1} parent=1 // pred_fallthru
      _
    // Predicated region
    $region14: #{tpu_custom_call.1} parent=1 // pred_check
      _
    $region15: #{tpu_custom_call.1} parent=1 // pred_check_branch
      %25 = sbr.rel (0) target = $region17
    $region16: #{tpu_custom_call.1} parent=1 // pred_region
      _
    $region17: #{tpu_custom_call.1} parent=1 // pred_fallthru
      _
    // Predicated region
    $region18: #{tpu_custom_call.1} parent=1 // pred_check
      _
    $region19: #{tpu_custom_call.1} parent=1 // pred_check_branch
      %27 = sbr.rel (0) target = $region21
    $region20: #{tpu_custom_call.1} parent=1 // pred_region
      _
    $region21: #{tpu_custom_call.1} parent=1 // pred_fallthru
      _
    // Predicated region
    $region22: #{tpu_custom_call.1} parent=1 // pred_check
      _
    $region23: #{tpu_custom_call.1} parent=1 // pred_check_branch
      %29 = sbr.rel (0) target = $region25
    $region24: #{tpu_custom_call.1} parent=1 // pred_region
      _
    $region25: #{tpu_custom_call.1} parent=1 // pred_fallthru
      _
    // Predicated region
    $region26: #{tpu_custom_call.1} parent=1 // pred_check
      _
    $region27: #{tpu_custom_call.1} parent=1 // pred_check_branch
      %31 = sbr.rel (0) target = $region29
    $region28: #{tpu_custom_call.1} parent=1 // pred_region
      _
    $region29: #{tpu_custom_call.1} parent=1 // pred_fallthru
      _
    // Predicated region
    $region30: #{tpu_custom_call.1} parent=1 // pred_check
      _
    $region31: #{tpu_custom_call.1} parent=1 // pred_check_branch
      %33 = sbr.rel (0) target = $region33
    $region32: #{tpu_custom_call.1} parent=1 // pred_region
      _
    $region33: #{tpu_custom_call.1} parent=1 // pred_fallthru
      _
    // Predicated region
    $region34: #{tpu_custom_call.1} parent=1 // pred_check
      _
    $region35: #{tpu_custom_call.1} parent=1 // pred_check_branch
      %35 = sbr.rel (0) target = $region37
    $region36: #{tpu_custom_call.1} parent=1 // pred_region
      _
    $region37: #{tpu_custom_call.1} parent=1 // pred_fallthru
      _
    // Predicated region
    $region38: #{tpu_custom_call.1} parent=1 // pred_check
      _
    $region39: #{tpu_custom_call.1} parent=1 // pred_check_branch
      %37 = sbr.rel (0) target = $region41
    $region40: #{tpu_custom_call.1} parent=1 // pred_region
      _
    $region41: #{tpu_custom_call.1} parent=1 // pred_fallthru
      _
    // Predicated region
    $region42: #{tpu_custom_call.1} parent=1 // pred_check
      _
    $region43: #{tpu_custom_call.1} parent=1 // pred_check_branch
      %39 = sbr.rel (0) target = $region45
    $region44: #{tpu_custom_call.1} parent=1 // pred_region
      _
    $region45: #{tpu_custom_call.1} parent=1 // pred_fallthru
      _
    // Predicated region
    $region46: #{tpu_custom_call.1} parent=1 // pred_check
      _
    $region47: #{tpu_custom_call.1} parent=1 // pred_check_branch
      %41 = sbr.rel (0) target = $region49
    $region48: #{tpu_custom_call.1} parent=1 // pred_region
      _
    $region49: #{tpu_custom_call.1} parent=1 // pred_fallthru
      _
    %v42 = vld [vmem:[%s0] sm:$0xff]
    %v43 = vld [vmem:[%s0 + $0x8] sm:$0xff]
    %v44 = vld [vmem:[%s1] sm:$0xff]
    %v45 = vld [vmem:[%s1 + $0x8] sm:$0xff]
    %v46 = vld [vmem:[%s2] sm:$0x7]
    %48 = vset.pattern.permute.xlu0 0
    %49 = vperm.xlu0 %48, %v44
    %v50 = vpop.permute.xlu0 %49
    %53 = vset.pattern.permute.xlu0 0
    %54 = vperm.xlu0 %53, %v45
    %v55 = vpop.permute.xlu0 %54
    %v57 = vperm.slane %v46, 0
    %v58 = vmul.f32 %v50, %v57
    %v59 = vmul.f32 %v55, %v57
    %60 = vset.pattern.permute.xlu0 1
    %61 = vperm.xlu0 %60, %v44
    %v62 = vpop.permute.xlu0 %61
    %64 = vset.pattern.permute.xlu0 1
    %65 = vperm.xlu0 %64, %v45
    %v66 = vpop.permute.xlu0 %65
    %v68 = vperm.slane %v46, 1
    %v69 = vmul.f32 %v62, %v68
    %v70 = vmul.f32 %v66, %v68
    %v71 = vadd.f32 %v58, %v69
    %v72 = vadd.f32 %v59, %v70
    %73 = vset.pattern.permute.xlu0 2
    %74 = vperm.xlu0 %73, %v44
    %v75 = vpop.permute.xlu0 %74
    %77 = vset.pattern.permute.xlu0 2
    %78 = vperm.xlu0 %77, %v45
    %v79 = vpop.permute.xlu0 %78
    %v81 = vperm.slane %v46, 2
    %v82 = vmul.f32 %v75, %v81
    %v83 = vmul.f32 %v79, %v81
    %v84 = vadd.f32 %v71, %v82
    %v85 = vadd.f32 %v72, %v83
    %v86 = vld [vmem:[%s3] sm:$0x1]
    %v88 = vperm.slane %v86, 0
    %v90 = vadd.f32 %v84, %v88
    %v91 = vadd.f32 %v85, %v88
    %v92 = vxor.u32 %v90, 2147483648
    %v93 = vxor.u32 %v91, 2147483648
    %v94 = vmul.f32 %v92, 1.442695
    %v95 = vpow.pop %v94
    %v96 = vmul.f32 %v93, 1.442695
    %v97 = vpow.pop %v96
    %v98 = vadd.f32 %v95, 1.0
    %v99 = vadd.f32 %v97, 1.0
    %v100 = vrcp.pop %v98
    %v101 = vmul.f32 %v98, %v100
    %v102 = vsub.f32 1.0, %v101
    %v103 = vmul.f32 %v100, %v102
    %v104 = vadd.f32 %v100, %v103
    %vm105 = vweird.f32 %v98
    %vm106 = vweird.f32 %v100
    %vm107 = vmor %vm105, %vm106
    %v108 = vsel %vm107, %v100, %v104
    %v109 = vand.u32 2147483647, %v98
    %vm110 = vcmp.eq.f32.partialorder %v109, 8.507059e+37
    %v111 = vand.u32 %v98, 2147483648
    %v112 = vor.u32 1.1754944e-38, %v111
    %v113 = vsel %vm110, %v112, %v108
    %v114 = vmul.f32 1.0, %v113
    %v115 = vrcp.pop %v99
    %v116 = vmul.f32 %v99, %v115
    %v117 = vsub.f32 1.0, %v116
    %v118 = vmul.f32 %v115, %v117
    %v119 = vadd.f32 %v115, %v118
    %vm120 = vweird.f32 %v99
    %vm121 = vweird.f32 %v115
    %vm122 = vmor %vm120, %vm121
    %v123 = vsel %vm122, %v115, %v119
    %v124 = vand.u32 2147483647, %v99
    %vm125 = vcmp.eq.f32.partialorder %v124, 8.507059e+37
    %v126 = vand.u32 %v99, 2147483648
    %v127 = vor.u32 1.1754944e-38, %v126
    %v128 = vsel %vm125, %v127, %v123
    %v129 = vmul.f32 1.0, %v128
    %v130 = vmul.f32 %v90, %v114
    %v131 = vmul.f32 %v91, %v129
    %v132 = vld [vmem:[%s4] sm:$0xff]
    %v133 = vld [vmem:[%s5] sm:$0x1]
    %v135 = vperm.slane %v133, 0
    %vm137 = vcmask 64512
    %v139 = vsel %vm137, %v130, 0
    %v142 = vsel %vm137, %v131, 0
    %144 = vmatpush.msra.mxu0 0.0
    %145 = vmatpush.msra.mxu0 0.0
    %146 = vmatpush.msra.mxu0 0.0
    %147 = vmatpush.msra.mxu0 0.0
    %148 = vmatpush.msra.mxu0 0.0
    %149 = vmatpush.msra.mxu0 0.0
    %150 = vmatpush.msra.mxu0 0.0
    %151 = vmatpush.msra.mxu0 0.0
    %152 = vmatpush.msra.mxu0 0.0
    %153 = vmatpush.msra.mxu0 0.0
    %154 = vmatpush.msra.mxu0 0.0
    %155 = vmatpush.msra.mxu0 0.0
    %156 = vmatpush.msra.mxu0 0.0
    %157 = vmatpush.msra.mxu0 0.0
    %158 = vmatpush.msra.mxu0 0.0
    %159 = vmatpush.msra.mxu0 %v132
    %160 = vmatmul.f32.gmra.mxu0 %v139
    %v161 = vpop.f32.mrf.mxu0
    %v162 = vadd.f32 %v135, %v161
    %163 = vmatmul.f32.gmra.mxu0 %v142
    %v164 = vpop.f32.mrf.mxu0
    %v165 = vadd.f32 %v135, %v164
    %166 = vdwg.mxu0
    %v167 = vld [vmem:[%s6] sm:$0xff]
    %v168 = vld [vmem:[%s6 + $0x8] sm:$0xff]
    %v169 = vld [vmem:[%s6 + $0x10] sm:$0xff]
    %v170 = vld [vmem:[%s6 + $0x18] sm:$0xff]
    %v171 = vld [vmem:[%s6 + $0x20] sm:$0xff]
    %v172 = vld [vmem:[%s6 + $0x28] sm:$0xff]
    %vm173 = vcmask 130048
    %v175 = vsel %vm173, %v162, 0
    %v178 = vsel %vm173, %v165, 0
    %180 = vmatpush.msra.mxu0 0.0
    %181 = vmatpush.msra.mxu0 0.0
    %182 = vmatpush.msra.mxu0 0.0
    %183 = vmatpush.msra.mxu0 0.0
    %184 = vmatpush.msra.mxu0 0.0
    %185 = vmatpush.msra.mxu0 0.0
    %186 = vmatpush.msra.mxu0 0.0
    %187 = vmatpush.msra.mxu0 0.0
    %188 = vmatpush.msra.mxu0 0.0
    %189 = vmatpush.msra.mxu0 0.0
    %190 = vmatpush.msra.mxu0 0.0
    %191 = vmatpush.msra.mxu0 0.0
    %192 = vmatpush.msra.mxu0 0.0
    %193 = vmatpush.msra.mxu0 0.0
    %194 = vmatpush.msra.mxu0 %v172
    %195 = vmatpush.msra.mxu0 %v171
    %196 = vmatmul.f32.gmra.mxu0 %v175
    %v197 = vpop.f32.mrf.mxu0
    %v198 = vadd.f32 0.0, %v197
    %199 = vmatmul.f32.gmra.mxu0 %v178
    %v200 = vpop.f32.mrf.mxu0
    %v201 = vadd.f32 0.0, %v200
    %202 = vdwg.mxu0
    %vm203 = vcmask 261120
    %v205 = vsel %vm203, %v42, 0
    %v208 = vsel %vm203, %v43, 0
    %210 = vmatpush.msra.mxu0 0.0
    %211 = vmatpush.msra.mxu0 0.0
    %212 = vmatpush.msra.mxu0 0.0
    %213 = vmatpush.msra.mxu0 0.0
    %214 = vmatpush.msra.mxu0 0.0
    %215 = vmatpush.msra.mxu0 0.0
    %216 = vmatpush.msra.mxu0 0.0
    %217 = vmatpush.msra.mxu0 0.0
    %218 = vmatpush.msra.mxu0 0.0
    %219 = vmatpush.msra.mxu0 0.0
    %220 = vmatpush.msra.mxu0 0.0
    %221 = vmatpush.msra.mxu0 0.0
    %222 = vmatpush.msra.mxu0 %v170
    %223 = vmatpush.msra.mxu0 %v169
    %224 = vmatpush.msra.mxu0 %v168
    %225 = vmatpush.msra.mxu0 %v167
    %226 = vmatmul.f32.gmra.mxu0 %v205
    %v227 = vpop.f32.mrf.mxu0
    %v228 = vadd.f32 %v198, %v227
    %229 = vmatmul.f32.gmra.mxu0 %v208
    %v230 = vpop.f32.mrf.mxu0
    %v231 = vadd.f32 %v201, %v230
    %232 = vdwg.mxu0
    %v233 = vld [vmem:[%s7] sm:$0x1]
    %v235 = vperm.slane %v233, 0
    %v237 = vadd.f32 %v228, %v235
    %v238 = vadd.f32 %v231, %v235
    %v239 = vsel %vm203, %v237, 0.0
    %240 = vadd.xlane.f32.xlu0 %v239
    %v241 = vpop.xlane.xlu0 %240
    %v242 = vsel %vm203, %v238, 0.0
    %243 = vadd.xlane.f32.xlu0 %v242
    %v244 = vpop.xlane.xlu0 %243
    %v245 = vrcp.pop 32.0
    %v246 = vmul.f32 32.0, %v245
    %v247 = vsub.f32 1.0, %v246
    %v248 = vmul.f32 %v245, %v247
    %v249 = vadd.f32 %v245, %v248
    %vm250 = vweird.f32 %v245
    %v251 = vsel %vm250, %v245, %v249
    %v252 = vmul.f32 %v241, %v251
    %v253 = vmul.f32 %v244, %v251
    %v254 = vsub.f32 %v237, %v252
    %v255 = vsub.f32 %v238, %v253
    %v256 = vmul.f32 %v254, %v254
    %v257 = vmul.f32 %v255, %v255
    %v258 = vsel %vm203, %v256, 0.0
    %259 = vadd.xlane.f32.xlu0 %v258
    %v260 = vpop.xlane.xlu0 %259
    %v261 = vsel %vm203, %v257, 0.0
    %262 = vadd.xlane.f32.xlu0 %v261
    %v263 = vpop.xlane.xlu0 %262
    %v264 = vmul.f32 %v260, %v251
    %v265 = vmul.f32 %v263, %v251
    %v266 = vadd.f32 %v264, 1e-05
    %v267 = vadd.f32 %v265, 1e-05
    %v268 = vrsqrt.pop %v266
    %v269 = vmul.f32 %v268, %v266
    %v270 = vmul.f32 %v269, %v268
    %v271 = vmul.f32 0.5, %v270
    %v272 = vsub.f32 1.5, %v271
    %v273 = vmul.f32 %v268, %v272
    %vm274 = vweird.f32 %v266
    %vm275 = vweird.f32 %v268
    %vm276 = vmor %vm274, %vm275
    %v277 = vsel %vm276, %v268, %v273
    %v278 = vrsqrt.pop %v267
    %v279 = vmul.f32 %v278, %v267
    %v280 = vmul.f32 %v279, %v278
    %v281 = vmul.f32 0.5, %v280
    %v282 = vsub.f32 1.5, %v281
    %v283 = vmul.f32 %v278, %v282
    %vm284 = vweird.f32 %v267
    %vm285 = vweird.f32 %v278
    %vm286 = vmor %vm284, %vm285
    %v287 = vsel %vm286, %v278, %v283
    %v288 = vmul.f32 %v254, %v277
    %v289 = vmul.f32 %v255, %v287
    %v290 = vld [vmem:[%s8] sm:$0x1]
    %v292 = vperm.slane %v290, 0
    %v294 = vmul.f32 %v288, %v292
    %v295 = vmul.f32 %v289, %v292
    %v296 = vld [vmem:[%s9] sm:$0x1]
    %v298 = vperm.slane %v296, 0
    %v300 = vadd.f32 %v294, %v298
    %v301 = vadd.f32 %v295, %v298
    %v302 = vxor.u32 %v300, 2147483648
    %v303 = vxor.u32 %v301, 2147483648
    %v304 = vmul.f32 %v302, 1.442695
    %v305 = vpow.pop %v304
    %v306 = vmul.f32 %v303, 1.442695
    %v307 = vpow.pop %v306
    %v308 = vadd.f32 %v305, 1.0
    %v309 = vadd.f32 %v307, 1.0
    %v310 = vrcp.pop %v308
    %v311 = vmul.f32 %v308, %v310
    %v312 = vsub.f32 1.0, %v311
    %v313 = vmul.f32 %v310, %v312
    %v314 = vadd.f32 %v310, %v313
    %vm315 = vweird.f32 %v308
    %vm316 = vweird.f32 %v310
    %vm317 = vmor %vm315, %vm316
    %v318 = vsel %vm317, %v310, %v314
    %v319 = vand.u32 2147483647, %v308
    %vm320 = vcmp.eq.f32.partialorder %v319, 8.507059e+37
    %v321 = vand.u32 %v308, 2147483648
    %v322 = vor.u32 1.1754944e-38, %v321
    %v323 = vsel %vm320, %v322, %v318
    %v324 = vmul.f32 1.0, %v323
    %v325 = vrcp.pop %v309
    %v326 = vmul.f32 %v309, %v325
    %v327 = vsub.f32 1.0, %v326
    %v328 = vmul.f32 %v325, %v327
    %v329 = vadd.f32 %v325, %v328
    %vm330 = vweird.f32 %v309
    %vm331 = vweird.f32 %v325
    %vm332 = vmor %vm330, %vm331
    %v333 = vsel %vm332, %v325, %v329
    %v334 = vand.u32 2147483647, %v309
    %vm335 = vcmp.eq.f32.partialorder %v334, 8.507059e+37
    %v336 = vand.u32 %v309, 2147483648
    %v337 = vor.u32 1.1754944e-38, %v336
    %v338 = vsel %vm335, %v337, %v333
    %v339 = vmul.f32 1.0, %v338
    %v340 = vmul.f32 %v300, %v324
    %v341 = vmul.f32 %v301, %v339
    %v342 = vld [vmem:[%s10] sm:$0xff]
    %v343 = vld [vmem:[%s10 + $0x8] sm:$0xff]
    %v344 = vld [vmem:[%s10 + $0x10] sm:$0xff]
    %v345 = vld [vmem:[%s10 + $0x18] sm:$0xff]
    %v346 = vld [vmem:[%s11] sm:$0x1]
    %v348 = vperm.slane %v346, 0
    %v351 = vsel %vm203, %v340, 0
    %v354 = vsel %vm203, %v341, 0
    %356 = vmatpush.msra.mxu0 0.0
    %357 = vmatpush.msra.mxu0 0.0
    %358 = vmatpush.msra.mxu0 0.0
    %359 = vmatpush.msra.mxu0 0.0
    %360 = vmatpush.msra.mxu0 0.0
    %361 = vmatpush.msra.mxu0 0.0
    %362 = vmatpush.msra.mxu0 0.0
    %363 = vmatpush.msra.mxu0 0.0
    %364 = vmatpush.msra.mxu0 0.0
    %365 = vmatpush.msra.mxu0 0.0
    %366 = vmatpush.msra.mxu0 0.0
    %367 = vmatpush.msra.mxu0 0.0
    %368 = vmatpush.msra.mxu0 %v345
    %369 = vmatpush.msra.mxu0 %v344
    %370 = vmatpush.msra.mxu0 %v343
    %371 = vmatpush.msra.mxu0 %v342
    %372 = vmatmul.f32.gmra.mxu0 %v351
    %v373 = vpop.f32.mrf.mxu0
    %v374 = vadd.f32 %v348, %v373
    %375 = vmatmul.f32.gmra.mxu0 %v354
    %v376 = vpop.f32.mrf.mxu0
    %v377 = vadd.f32 %v348, %v376
    %378 = vdwg.mxu0
    %v379 = vadd.f32 %v374, %v42
    %v380 = vadd.f32 %v377, %v43
    %381 = vst.msk [vmem:[#allocation2] sm:$0xff] %vm203, %v379
    %382 = vst.msk [vmem:[#allocation2 + $0x8] sm:$0xff] %vm203, %v380
    // Predicated region
    $region50: #{tpu_custom_call.1} parent=1 // pred_check
      _
    $region51: #{tpu_custom_call.1} parent=1 // pred_check_branch
      %384 = sbr.rel (0) target = $region53
    $region52: #{tpu_custom_call.1} parent=1 // pred_region
      %386 = vsyncadd [#allocation3], 0
      %s387 = sshll.u32 [#allocation2], 4
      %s388 = int_to_ptr.vmem [resolvable:$true] %s387
      %s389 = sshll.u32 %s12, 4
      %s390 = int_to_ptr.hbm [resolvable:$true] %s389
      %395 = dma.vmem_to_hbm [thread:$0]  %s388, 256, %s390, [#allocation3], 128, 128, 8
    $region53: #{tpu_custom_call.1} parent=1 // pred_fallthru
      _
    // Predicated region
    $region54: #{tpu_custom_call.1} parent=1 // pred_check
      _
    $region55: #{tpu_custom_call.1} parent=1 // pred_check_branch
      %397 = sbr.rel (0) target = $region57
    $region56: #{tpu_custom_call.1} parent=1 // pred_region
      %399 = dma.done [#allocation3], 256
    $region57: #{tpu_custom_call.1} parent=1 // pred_fallthru
      _
    %400 = vsyncpa [#allocation3], 1

</llo_original>
